<compile_context>
chip_gen: v7x
topology: tpu7x:2x2x1
jax: 0.10.0
libtpu: 0.0.40
codegen_flags: <defaults>
</compile_context>

<pallas_src>
import jax
import jax.numpy as jnp
from jax import lax
from jax.experimental import pallas as pl
from jax.experimental.pallas import tpu as pltpu


# ---------------------------------------------------------------------------
# Kernel: one (tm x tn) output tile; K is the last ("arbitrary") grid axis.
# ---------------------------------------------------------------------------
def _matmul_wt_kernel(x_ref, w_ref, o_ref, acc_ref):
    @pl.when(pl.program_id(2) == 0)
    def _init():
        acc_ref[...] = jnp.zeros_like(acc_ref)

    # x_ref: [tm, tk], w_ref: [tn, tk] -> contract over the shared last dim,
    # i.e. x @ w.T without ever materializing a transposed weight in HBM.
    acc_ref[...] += lax.dot_general(
        x_ref[...],
        w_ref[...],
        dimension_numbers=(((1,), (1,)), ((), ())),
        preferred_element_type=jnp.float32,
    )

    @pl.when(pl.program_id(2) == pl.num_programs(2) - 1)
    def _store():
        o_ref[...] = acc_ref[...].astype(o_ref.dtype)


# ---------------------------------------------------------------------------
# Tiling / wrapper
# ---------------------------------------------------------------------------
def _round_up(x, m):
    return ((x + m - 1) // m) * m


def _choose_tiles(M, N, K):
    tm = min(512, _round_up(M, 8))      # rows: multiple of 8 sublanes, up to 512
    tn = min(512, _round_up(N, 128))    # cols: lane-dense (multiple of 128)
    tk = K if K <= 1024 else 512        # contraction: full extent when small
    # Worst case VMEM: 4B * (2*tm*tk + 2*tn*tk + 3*tm*tn) ~= 11 MiB at the caps,
    # well under the 32 MiB default scoped limit and v7x's 64 MiB physical VMEM.
    return tm, tn, tk


def _pallas_linear_no_bias(x, weight):
    """x: [M, K] f32, weight: [N, K] f32  ->  x @ weight.T  as [M, N] f32."""
    M, K = x.shape
    N = weight.shape[0]
    tm, tn, tk = _choose_tiles(M, N, K)
    Mp, Np, Kp = _round_up(M, tm), _round_up(N, tn), _round_up(K, tk)

    xp = x if (Mp == M and Kp == K) else jnp.pad(x, ((0, Mp - M), (0, Kp - K)))
    wp = weight if (Np == N and Kp == K) else jnp.pad(
        weight, ((0, Np - N), (0, Kp - K)))

    grid = (Mp // tm, Np // tn, Kp // tk)

    cost = pl.CostEstimate(
        flops=2 * Mp * Np * Kp,
        transcendentals=0,
        bytes_accessed=4 * (Mp * Kp + Np * Kp + Mp * Np),
    )

    out = pl.pallas_call(
        _matmul_wt_kernel,
        out_shape=jax.ShapeDtypeStruct((Mp, Np), jnp.float32),
        grid_spec=pltpu.PrefetchScalarGridSpec(
            num_scalar_prefetch=0,
            grid=grid,
            in_specs=[
                pl.BlockSpec((tm, tk), lambda i, j, k: (i, k)),   # LHS tile
                pl.BlockSpec((tn, tk), lambda i, j, k: (j, k)),   # weight tile
            ],
            out_specs=pl.BlockSpec((tm, tn), lambda i, j, k: (i, j)),
            scratch_shapes=[pltpu.VMEM((tm, tn), jnp.float32)],
        ),
        compiler_params=pltpu.CompilerParams(
            dimension_semantics=("parallel", "parallel", "arbitrary"),
            # Tiles cap at ~11 MiB double-buffered; 48 MiB fits v7x's 64 MiB
            # VMEM while leaving headroom on v5e/v6e (128 MiB).
            vmem_limit_bytes=48 * 1024 * 1024,
        ),
        cost_estimate=cost,
    )(xp, wp)

    if Mp != M or Np != N:
        out = out[:M, :N]
    return out


# ---------------------------------------------------------------------------
# ZonoLinear forward: returns (new_center, new_generators)
# ---------------------------------------------------------------------------
@jax.jit
def zono_linear(center, generators, weight, bias):
    """center: [B, K]; generators: [G, B, K]; weight: [N, K]; bias: [N] or None."""
    B, K = center.shape
    G = generators.shape[0]
    N = weight.shape[0]

    # Fuse center + generators into a single LHS -> one grid over all rows.
    x_all = jnp.concatenate([center, generators.reshape(G * B, K)], axis=0)
    fused = _pallas_linear_no_bias(x_all, weight)          # [(G+1)*B, N]

    out_center = fused[:B]
    if bias is not None:
        out_center = out_center + bias[None, :]            # tiny B*N add, outside kernel
    out_gens = fused[B:].reshape(G, B, N)
    return out_center, out_gens


if __name__ == "__main__":
    # Deterministic synthetic parameters / inputs (nn.Linear(in=32, out=64)).
    B, G, K, N = 2, 8, 32, 64
    key = jax.random.PRNGKey(0)
    k_w, k_b, k_c, k_g = jax.random.split(key, 4)

    weight = jax.random.normal(k_w, (N, K), dtype=jnp.float32) * 0.1   # nn.Linear.weight
    bias = jax.random.normal(k_b, (N,), dtype=jnp.float32) * 0.1       # nn.Linear.bias
    center = jax.random.normal(k_c, (B, K), dtype=jnp.float32)         # Zonotope.center
    generators = jax.random.normal(k_g, (G, B, K), dtype=jnp.float32)  # Zonotope.generators

    out_c, out_g = zono_linear(center, generators, weight, bias)
    jax.block_until_ready((out_c, out_g))

    # Reference check (pure JAX, matches F.linear semantics).
    ref_c = center @ weight.T + bias
    ref_g = jnp.einsum("gbk,nk->gbn", generators, weight)
    assert out_c.shape == (B, N) and out_g.shape == (G, B, N)
    assert jnp.allclose(out_c, ref_c, atol=1e-5, rtol=1e-5)
    assert jnp.allclose(out_g, ref_g, atol=1e-5, rtol=1e-5)

    print("KERNEL_OK")
</pallas_src>

<mosaic_0001>
module attributes {stable_mosaic.version = 11 : i64} {
  func.func @_matmul_wt_kernel(%arg0: i32, %arg1: i32, %arg2: i32, %arg3: memref<24x32xf32, #tpu.memory_space<vmem>>, %arg4: memref<128x32xf32, #tpu.memory_space<vmem>>, %arg5: memref<24x128xf32, #tpu.memory_space<vmem>>, %arg6: memref<24x128xf32, #tpu.memory_space<vmem>>) attributes {dimension_semantics = [#tpu.dimension_semantics<parallel>, #tpu.dimension_semantics<parallel>, #tpu.dimension_semantics<arbitrary>], iteration_bounds = array<i64: 1, 1, 1>, scalar_prefetch = 0 : i64, scratch_operands = 1 : i64, tpu.core_type = #tpu.core_type<tc>, window_params = [{transform_indices = @transform_0, window_bounds = array<i64: 24, 32>}, {transform_indices = @transform_1, window_bounds = array<i64: 128, 32>}, {transform_indices = @transform_2, window_bounds = array<i64: 24, 128>}]} {
    %c0_i32 = arith.constant 0 : i32
    %0 = arith.cmpi eq, %arg2, %c0_i32 : i32
    %1 = arith.extui %0 : i1 to i32
    %c0_i32_0 = arith.constant 0 : i32
    %2 = arith.cmpi ne, %1, %c0_i32_0 : i32
    scf.if %2 {
      %cst_10 = arith.constant 0.000000e+00 : f32
      %12 = vector.broadcast %cst_10 : f32 to vector<24x128xf32>
      %c0_11 = arith.constant 0 : index
      %c0_12 = arith.constant 0 : index
      %13 = vector.load %arg6[%c0_11, %c0_12] : memref<24x128xf32, #tpu.memory_space<vmem>>, vector<24x128xf32>
      tpu.vector_store %arg6[%c0_11, %c0_12], %12 {strides = array<i32>} : memref<24x128xf32, #tpu.memory_space<vmem>>, vector<24x128xf32>,
    } else {
    }
    %c0 = arith.constant 0 : index
    %c0_1 = arith.constant 0 : index
    %3 = vector.load %arg6[%c0, %c0_1] : memref<24x128xf32, #tpu.memory_space<vmem>>, vector<24x128xf32>
    %c0_2 = arith.constant 0 : index
    %c0_3 = arith.constant 0 : index
    %4 = vector.load %arg3[%c0_2, %c0_3] : memref<24x32xf32, #tpu.memory_space<vmem>>, vector<24x32xf32>
    %c0_4 = arith.constant 0 : index
    %c0_5 = arith.constant 0 : index
    %5 = vector.load %arg4[%c0_4, %c0_5] : memref<128x32xf32, #tpu.memory_space<vmem>>, vector<128x32xf32>
    %cst = arith.constant dense<0.000000e+00> : vector<24x128xf32>
    %6 = tpu.matmul %4, %5, %cst {dimension_numbers = #tpu.dot_dimension_numbers<[1], [1], [0], [0], [0, 0, 1, 0], [], []>} : vector<24x32xf32>, vector<128x32xf32>, vector<24x128xf32> -> vector<24x128xf32>
    %7 = arith.addf %3, %6 : vector<24x128xf32>
    %c0_6 = arith.constant 0 : index
    %c0_7 = arith.constant 0 : index
    %8 = vector.load %arg6[%c0_6, %c0_7] : memref<24x128xf32, #tpu.memory_space<vmem>>, vector<24x128xf32>
    tpu.vector_store %arg6[%c0_6, %c0_7], %7 {strides = array<i32>} : memref<24x128xf32, #tpu.memory_space<vmem>>, vector<24x128xf32>,
    %c0_i32_8 = arith.constant 0 : i32
    %9 = arith.cmpi eq, %arg2, %c0_i32_8 : i32
    %10 = arith.extui %9 : i1 to i32
    %c0_i32_9 = arith.constant 0 : i32
    %11 = arith.cmpi ne, %10, %c0_i32_9 : i32
    scf.if %11 {
      %c0_10 = arith.constant 0 : index
      %c0_11 = arith.constant 0 : index
      %12 = vector.load %arg6[%c0_10, %c0_11] : memref<24x128xf32, #tpu.memory_space<vmem>>, vector<24x128xf32>
      %c0_12 = arith.constant 0 : index
      %c0_13 = arith.constant 0 : index
      %13 = vector.load %arg5[%c0_12, %c0_13] : memref<24x128xf32, #tpu.memory_space<vmem>>, vector<24x128xf32>
      tpu.vector_store %arg5[%c0_12, %c0_13], %12 {strides = array<i32>} : memref<24x128xf32, #tpu.memory_space<vmem>>, vector<24x128xf32>,
    } else {
    }
    return
  }
  func.func @transform_0(%arg0: i32, %arg1: i32, %arg2: i32) -> (i32, i32) {
    %c0_i32 = arith.constant 0 : i32
    return %arg0, %arg2 : i32, i32
  }
  func.func @transform_1(%arg0: i32, %arg1: i32, %arg2: i32) -> (i32, i32) {
    %c0_i32 = arith.constant 0 : i32
    return %arg1, %arg2 : i32, i32
  }
  func.func @transform_2(%arg0: i32, %arg1: i32, %arg2: i32) -> (i32, i32) {
    %c0_i32 = arith.constant 0 : i32
    return %arg0, %arg1 : i32, i32
  }
}

</mosaic_0001>

<llo_original>
// kernel: zono_linear.1
$region0: #{zono_linear.1}
  #allocation0 [shape = 'u32[]', space=smem, size = 0x4, offset = 0x4, fixed_abs, tag = 'smem constant byte address 0x4 - core index']
  #allocation1 [shape = 'u32[144,128]{1,0:T(1,128)}', space=vmem, size = 0x12000, scoped, tag = 'internal scratch']
  #allocation2 [shape = 'f32[24,128]{1,0:T(8,128)}', space=vmem, size = 0x3000, scoped, tag = 'scratch operand']
  %s0 = inlined_call_operand.vmem [shape: f32[24,32], index: 0, kind: input, shape index: {}]
  %s1 = inlined_call_operand.vmem [shape: f32[128,32], index: 1, kind: input, shape index: {}]
  %s2 = inlined_call_operand.vmem [shape: f32[24,128], index: 2, kind: output, shape index: {}]
  %s3 = sld [smem:[#allocation0]]
  $region26: #{zono_linear.1} parent=0
    _
  %s5 = ssub.s32 1, %s3
  %s6 = scalar_select 0, %s5, %s3
  // Predicated region
  $region2: #{zono_linear.1} parent=0 // pred_check
    _
  $region3: #{zono_linear.1} parent=0 // pred_check_branch
    %8 = sbr.rel (0) target = $region5
  $region4: #{zono_linear.1} parent=0 // pred_region
    _
  $region5: #{zono_linear.1} parent=0 // pred_fallthru
    _
  // Predicated region
  $region6: #{zono_linear.1} parent=0 // pred_check
    _
  $region7: #{zono_linear.1} parent=0 // pred_check_branch
    %10 = sbr.rel (0) target = $region9
  $region8: #{zono_linear.1} parent=0 // pred_region
    _
  $region9: #{zono_linear.1} parent=0 // pred_fallthru
    _
  %p11 = scmp.eq.s32.totalorder 0, 0
  // Predicated region
  $region10: #{zono_linear.1} parent=0 // pred_check
    %p12 = pneg %p11
  $region11: #{zono_linear.1} parent=0 // pred_check_branch
    %14 = sbr.rel (%p12) target = $region13
  $region12: #{zono_linear.1} parent=0 // pred_region
    %15 = vst [vmem:[#allocation2] sm:$0xff] 0.0
    %16 = vst [vmem:[#allocation2 + $0x8] sm:$0xff] 0.0
    %17 = vst [vmem:[#allocation2 + $0x10] sm:$0xff] 0.0
  $region13: #{zono_linear.1} parent=0 // pred_fallthru
    _
  %v18 = vld [vmem:[#allocation2] sm:$0xff]
  %v19 = vld [vmem:[#allocation2 + $0x8] sm:$0xff]
  %v20 = vld [vmem:[#allocation2 + $0x10] sm:$0xff]
  %v21 = vld [vmem:[%s0] sm:$0xff]
  %v22 = vld [vmem:[%s0 + $0x8] sm:$0xff]
  %v23 = vld [vmem:[%s0 + $0x10] sm:$0xff]
  %v24 = vld [vmem:[%s1] sm:$0xff]
  %v25 = vld [vmem:[%s1 + $0x8] sm:$0xff]
  %v26 = vld [vmem:[%s1 + $0x10] sm:$0xff]
  %v27 = vld [vmem:[%s1 + $0x18] sm:$0xff]
  %v28 = vld [vmem:[%s1 + $0x20] sm:$0xff]
  %v29 = vld [vmem:[%s1 + $0x28] sm:$0xff]
  %v30 = vld [vmem:[%s1 + $0x30] sm:$0xff]
  %v31 = vld [vmem:[%s1 + $0x38] sm:$0xff]
  %v32 = vld [vmem:[%s1 + $0x40] sm:$0xff]
  %v33 = vld [vmem:[%s1 + $0x48] sm:$0xff]
  %v34 = vld [vmem:[%s1 + $0x50] sm:$0xff]
  %v35 = vld [vmem:[%s1 + $0x58] sm:$0xff]
  %v36 = vld [vmem:[%s1 + $0x60] sm:$0xff]
  %v37 = vld [vmem:[%s1 + $0x68] sm:$0xff]
  %v38 = vld [vmem:[%s1 + $0x70] sm:$0xff]
  %v39 = vld [vmem:[%s1 + $0x78] sm:$0xff]
  %vm40 = vcmask 261120
  %v42 = vsel %vm40, %v21, 0
  %v45 = vsel %vm40, %v22, 0
  %v48 = vsel %vm40, %v23, 0
  %v51 = vsel %vm40, %v24, 0
  %v54 = vsel %vm40, %v25, 0
  %v57 = vsel %vm40, %v26, 0
  %v60 = vsel %vm40, %v27, 0
  %v63 = vsel %vm40, %v28, 0
  %v66 = vsel %vm40, %v29, 0
  %v69 = vsel %vm40, %v30, 0
  %v72 = vsel %vm40, %v31, 0
  %v75 = vsel %vm40, %v32, 0
  %v78 = vsel %vm40, %v33, 0
  %v81 = vsel %vm40, %v34, 0
  %v84 = vsel %vm40, %v35, 0
  %v87 = vsel %vm40, %v36, 0
  %v90 = vsel %vm40, %v37, 0
  %v93 = vsel %vm40, %v38, 0
  %v96 = vsel %vm40, %v39, 0
  %98 = vmatprep.subr.mxu0 0.0
  %99 = vmatpush1.xpose.msra.mxu0 %v51
  %100 = vmatprep.subr.mxu0 0.0
  %101 = vmatpush1.xpose.msra.mxu0 %v54
  %102 = vmatprep.subr.mxu0 0.0
  %103 = vmatpush1.xpose.msra.mxu0 %v57
  %104 = vmatprep.subr.mxu0 0.0
  %105 = vmatpush1.xpose.msra.mxu0 %v60
  %106 = vmatprep.subr.mxu0 0.0
  %107 = vmatpush1.xpose.msra.mxu0 %v63
  %108 = vmatprep.subr.mxu0 0.0
  %109 = vmatpush1.xpose.msra.mxu0 %v66
  %110 = vmatprep.subr.mxu0 0.0
  %111 = vmatpush1.xpose.msra.mxu0 %v69
  %112 = vmatprep.subr.mxu0 0.0
  %113 = vmatpush1.xpose.msra.mxu0 %v72
  %114 = vmatprep.subr.mxu0 0.0
  %115 = vmatpush1.xpose.msra.mxu0 %v75
  %116 = vmatprep.subr.mxu0 0.0
  %117 = vmatpush1.xpose.msra.mxu0 %v78
  %118 = vmatprep.subr.mxu0 0.0
  %119 = vmatpush1.xpose.msra.mxu0 %v81
  %120 = vmatprep.subr.mxu0 0.0
  %121 = vmatpush1.xpose.msra.mxu0 %v84
  %122 = vmatprep.subr.mxu0 0.0
  %123 = vmatpush1.xpose.msra.mxu0 %v87
  %124 = vmatprep.subr.mxu0 0.0
  %125 = vmatpush1.xpose.msra.mxu0 %v90
  %126 = vmatprep.subr.mxu0 0.0
  %127 = vmatpush1.xpose.msra.mxu0 %v93
  %128 = vmatprep.subr.mxu0 0.0
  %129 = vmatpush1.xpose.msra.mxu0 %v96
  %130 = vmatprep.subr.mxu0 0.0
  %131 = vmatpush1.xpose.msra.mxu0 0.0
  %132 = vmatprep.subr.mxu0 0.0
  %133 = vmatpush1.xpose.msra.mxu0 0.0
  %134 = vmatprep.subr.mxu0 0.0
  %135 = vmatpush1.xpose.msra.mxu0 0.0
  %136 = vmatprep.subr.mxu0 0.0
  %137 = vmatpush1.xpose.msra.mxu0 0.0
  %138 = vmatprep.subr.mxu0 0.0
  %139 = vmatpush1.xpose.msra.mxu0 0.0
  %140 = vmatprep.subr.mxu0 0.0
  %141 = vmatpush1.xpose.msra.mxu0 0.0
  %142 = vmatprep.subr.mxu0 0.0
  %143 = vmatpush1.xpose.msra.mxu0 0.0
  %144 = vmatprep.subr.mxu0 0.0
  %145 = vmatpush1.xpose.msra.mxu0 0.0
  %146 = vmatprep.subr.mxu0 0.0
  %147 = vmatpush1.xpose.msra.mxu0 0.0
  %148 = vmatprep.subr.mxu0 0.0
  %149 = vmatpush1.xpose.msra.mxu0 0.0
  %150 = vmatprep.subr.mxu0 0.0
  %151 = vmatpush1.xpose.msra.mxu0 0.0
  %152 = vmatprep.subr.mxu0 0.0
  %153 = vmatpush1.xpose.msra.mxu0 0.0
  %154 = vmatprep.subr.mxu0 0.0
  %155 = vmatpush1.xpose.msra.mxu0 0.0
  %156 = vmatprep.subr.mxu0 0.0
  %157 = vmatpush1.xpose.msra.mxu0 0.0
  %158 = vmatprep.subr.mxu0 0.0
  %159 = vmatpush1.xpose.msra.mxu0 0.0
  %160 = vmatprep.subr.mxu0 0.0
  %161 = vmatpush1.xpose.msra.mxu0 0.0
  %162 = vmatprep.mubr.f32.mxu0 0.0
  %163 = vmatmul.mubr.f32.gmra.mrb[0].mxu0 %v42
  %v164 = vpop.f32.mrb[0].mxu0
  %v165 = vadd.f32 0.0, %v164
  %v166 = vpop.f32.mrb[0].mxu0
  %167 = vmatprep.mubr.f32.mxu0 0.0
  %168 = vmatmul.mubr.f32.gmra.mrb[0].mxu0 %v45
  %v169 = vpop.f32.mrb[0].mxu0
  %v170 = vadd.f32 0.0, %v169
  %v171 = vpop.f32.mrb[0].mxu0
  %172 = vmatprep.mubr.f32.mxu0 0.0
  %173 = vmatmul.mubr.f32.gmra.mrb[0].mxu0 %v48
  %v174 = vpop.f32.mrb[0].mxu0
  %v175 = vadd.f32 0.0, %v174
  %v176 = vpop.f32.mrb[0].mxu0
  %177 = vdwg.mxu0
  %v178 = vadd.f32 %v18, %v165
  %v179 = vadd.f32 %v19, %v170
  %v180 = vadd.f32 %v20, %v175
  %181 = vst [vmem:[#allocation2] sm:$0xff] %v178
  %182 = vst [vmem:[#allocation2 + $0x8] sm:$0xff] %v179
  %183 = vst [vmem:[#allocation2 + $0x10] sm:$0xff] %v180
  // Predicated region
  $region14: #{zono_linear.1} parent=0 // pred_check
    %p184 = pneg %p11
  $region15: #{zono_linear.1} parent=0 // pred_check_branch
    %186 = sbr.rel (%p184) target = $region17
  $region16: #{zono_linear.1} parent=0 // pred_region
    %v187 = vld [vmem:[#allocation2] sm:$0xff]
    %v188 = vld [vmem:[#allocation2 + $0x8] sm:$0xff]
    %v189 = vld [vmem:[#allocation2 + $0x10] sm:$0xff]
    %190 = vst [vmem:[%s2] sm:$0xff] %v187
    %191 = vst [vmem:[%s2 + $0x8] sm:$0xff] %v188
    %192 = vst [vmem:[%s2 + $0x10] sm:$0xff] %v189
  $region17: #{zono_linear.1} parent=0 // pred_fallthru
    _
  // Predicated region
  $region18: #{zono_linear.1} parent=0 // pred_check
    _
  $region19: #{zono_linear.1} parent=0 // pred_check_branch
    %194 = sbr.rel (0) target = $region21
  $region20: #{zono_linear.1} parent=0 // pred_region
    _
  $region21: #{zono_linear.1} parent=0 // pred_fallthru
    _
  // Predicated region
  $region22: #{zono_linear.1} parent=0 // pred_check
    _
  $region23: #{zono_linear.1} parent=0 // pred_check_branch
    %196 = sbr.rel (0) target = $region25
  $region24: #{zono_linear.1} parent=0 // pred_region
    _
  $region25: #{zono_linear.1} parent=0 // pred_fallthru
    _

</llo_original>
